<compile_context>
chip_gen: v7x
topology: tpu7x:2x2x1
jax: 0.10.0
libtpu: 0.0.40
codegen_flags: <defaults>
</compile_context>

<pallas_src>
import functools

import jax
import jax.numpy as jnp
from jax import lax
from jax.experimental import pallas as pl
from jax.experimental.pallas import tpu as pltpu

LANE = 128
SUBLANE = 8
ALIGN = SUBLANE * LANE          # 1024-element padding granularity (usually a no-op)
UNROLL_LIMIT = 8                # python-unroll temporal loops up to this T
VMEM_LIMIT_BYTES = 32 * 1024 * 1024   # <= physical VMEM on every generation


def _round_up(x, m):
    return ((x + m - 1) // m) * m


@functools.lru_cache(maxsize=1)
def _vmem_budget_bytes():
    """Per-generation VMEM budget for pipeline buffers + scratch."""
    try:
        kind = jax.devices()[0].device_kind.lower()
    except Exception:
        kind = ""
    if ("v6" in kind) or ("v7" in kind) or ("7x" in kind):
        # v6e: 128 MiB physical; v7x: 64 MiB physical / 32 MiB default scope.
        return 24 * 1024 * 1024
    # v5e (and older): 16 MiB default scoped VMEM — stay comfortably below.
    return 12 * 1024 * 1024


# ---------------------------------------------------------------------------
# Kernels
# ---------------------------------------------------------------------------
def _if_temporal_kernel(thresh_ref, x_ref, o_ref, mem_ref, cnt_ref, spk_ref, *, T):
    """SNN (T > 0) forward for one (T, bs, 128) block.

    x_ref / o_ref : (T, bs, 128) VMEM blocks; thresh_ref: (1,) f32 in SMEM.
    mem_ref / cnt_ref : (bs, 128) f32 VMEM scratch (membrane, spike count).
    spk_ref : (T, bs, 128) f32 VMEM scratch (raw spikes kept in f32 so the
              output is written exactly once, no bf16 readback/cast).
    """
    th = thresh_ref[0]
    half_th = 0.5 * th

    # mem = 0.5 * thre ; spike_count = 0
    mem_ref[...] = jnp.full(mem_ref.shape, half_th, dtype=jnp.float32)
    cnt_ref[...] = jnp.zeros_like(cnt_ref)

    # --- sequential integrate-and-fire over T (VALU-lean: cmp + select) ----
    def integrate(t):
        mem = mem_ref[...] + x_ref[t].astype(jnp.float32)
        fired = mem >= th                              # ZIF forward: (mem - th >= 0)
        spike = fired.astype(jnp.float32)
        mem_ref[...] = jnp.where(fired, mem - th, mem)  # mem - spike*th without the mul
        cnt_ref[...] = cnt_ref[...] + spike
        spk_ref[t] = spike

    if T <= UNROLL_LIMIT:
        for t in range(T):
            integrate(t)
    else:
        def body(t, carry):
            integrate(t)
            return carry
        lax.fori_loop(0, T, body, 0, unroll=2)

    # --- end-of-window compensation -> per-neuron "new_thre" ----------------
    mem = mem_ref[...]
    cnt = cnt_ref[...]
    compen_value = jnp.minimum(mem - half_th + cnt * th, T * th)   # clamp(max=T*thre)
    safe_cnt = jnp.where(cnt > 0.0, cnt, 1.0)                      # avoid 0/0
    # exact divide (once per element per block); pl.reciprocal(approx=True)
    # would move it to the EUP but introduces ~1e-3 rel error vs. the module.
    new_thre = jnp.where((compen_value > 0.0) & (cnt > 0.0),
                         compen_value / safe_cnt,
                         0.0)

    # --- rescale spikes; single store to o_ref per timestep -----------------
    def rescale(t):
        o_ref[t] = (spk_ref[t] * new_thre).astype(o_ref.dtype)

    if T <= UNROLL_LIMIT:
        for t in range(T):
            rescale(t)
    else:
        def body2(t, carry):
            rescale(t)
            return carry
        lax.fori_loop(0, T, body2, 0, unroll=2)


def _if_qcfs_kernel(thresh_ref, x_ref, o_ref, *, L):
    """ANN (T == 0) forward: QCFS quantized-clipped activation.

    x/thresh, clamp(0,1), floor(*L+0.5)/L, *thresh with the per-element divide
    and two muls folded into two precomputed scalars.
    """
    th = thresh_ref[0]
    scale_in = L / th          # scalar, computed once per block
    scale_out = th / L
    y = jnp.clip(x_ref[...].astype(jnp.float32), 0.0, th)
    o_ref[...] = (jnp.floor(y * scale_in + 0.5) * scale_out).astype(o_ref.dtype)


# ---------------------------------------------------------------------------
# Wrapper (glue: reshapes, minimal padding, pallas_call setup)
# ---------------------------------------------------------------------------
def _pick_block_rows(R, per_row_bytes, budget):
    """Rows-of-128 per block: fit the VMEM budget but keep >= 2 (pref. >= 4)
    grid steps for pipeline overlap and v7x megacore sharding."""
    bs = max(SUBLANE, (budget // per_row_bytes) // SUBLANE * SUBLANE)
    bs = min(bs, R)
    if R >= 4 * SUBLANE:
        min_steps = 4
    elif R >= 2 * SUBLANE:
        min_steps = 2
    else:
        min_steps = 1
    bs = min(bs, max(SUBLANE, (R // min_steps) // SUBLANE * SUBLANE))
    return bs


def if_forward(x, thresh, *, T=0, L=8):
    """Forward pass of the IF module.

    x: (T*B, C, H, W) when T > 0, any NCHW tensor when T == 0.
    thresh: scalar (the nn.Parameter of shape [1]); assumed > 0.
    Output dtype matches the input dtype (math is done in f32 in-kernel).
    """
    x = jnp.asarray(x)
    if not jnp.issubdtype(x.dtype, jnp.floating):
        x = x.astype(jnp.float32)
    out_dtype = x.dtype
    itemsize = jnp.dtype(out_dtype).itemsize

    thresh_arr = jnp.asarray(thresh, jnp.float32).reshape((1,))
    smem_spec = pl.BlockSpec(memory_space=pltpu.MemorySpace.SMEM)
    budget = _vmem_budget_bytes()
    cparams = pltpu.CompilerParams(
        dimension_semantics=("parallel",),
        vmem_limit_bytes=VMEM_LIMIT_BYTES)

    if T > 0:
        orig_shape = x.shape
        assert x.shape[0] % T == 0, "leading dim must be T * batch"
        N = x.size // T

        # pad only to 1024-element granularity (no-op for typical CNN shapes);
        # the grid itself is ragged-tolerant (pl.cdiv), so no bs*128 padding.
        Np = _round_up(N, ALIGN)
        R = Np // LANE                                 # multiple of SUBLANE

        # VMEM per row-of-128: in + out double-buffered (out dtype),
        # f32 spike scratch (T rows), f32 mem + cnt carries.
        per_row = 4 * T * LANE * itemsize + T * LANE * 4 + 2 * LANE * 4
        bs = _pick_block_rows(R, per_row, budget)
        grid = pl.cdiv(R, bs)

        x2 = x.reshape(T, N)
        if Np != N:                                    # rare: non-1024-aligned sizes
            x2 = jnp.pad(x2, ((0, 0), (0, Np - N)))
        x3 = x2.reshape(T, R, LANE)

        out = pl.pallas_call(
            functools.partial(_if_temporal_kernel, T=T),
            out_shape=jax.ShapeDtypeStruct((T, R, LANE), out_dtype),
            grid=(grid,),
            in_specs=[smem_spec,
                      pl.BlockSpec((T, bs, LANE), lambda i: (0, i, 0))],
            out_specs=pl.BlockSpec((T, bs, LANE), lambda i: (0, i, 0)),
            scratch_shapes=[pltpu.VMEM((bs, LANE), jnp.float32),      # membrane
                            pltpu.VMEM((bs, LANE), jnp.float32),      # spike count
                            pltpu.VMEM((T, bs, LANE), jnp.float32)],  # raw spikes
            compiler_params=cparams,
        )(thresh_arr, x3)

        out = out.reshape(T, Np)
        if Np != N:
            out = out[:, :N]
        return out.reshape(orig_shape)                 # MergeTemporalDim

    else:
        orig_shape = x.shape
        total = x.size

        Np = _round_up(total, ALIGN)
        R = Np // LANE

        per_row = 4 * LANE * itemsize                  # in + out, double-buffered
        bs = _pick_block_rows(R, per_row, budget)
        grid = pl.cdiv(R, bs)

        xf = x.reshape(-1)
        if Np != total:
            xf = jnp.pad(xf, (0, Np - total))
        x2 = xf.reshape(R, LANE)

        out = pl.pallas_call(
            functools.partial(_if_qcfs_kernel, L=float(L)),
            out_shape=jax.ShapeDtypeStruct((R, LANE), out_dtype),
            grid=(grid,),
            in_specs=[smem_spec,
                      pl.BlockSpec((bs, LANE), lambda i: (i, 0))],
            out_specs=pl.BlockSpec((bs, LANE), lambda i: (i, 0)),
            compiler_params=cparams,
        )(thresh_arr, x2)

        out = out.reshape(Np)
        if Np != total:
            out = out[:total]
        return out.reshape(orig_shape)


# ---------------------------------------------------------------------------
# Pure-JAX references (mirror the PyTorch semantics) for verification
# ---------------------------------------------------------------------------
def if_ref_temporal(x, thresh, T):
    TB = x.shape[0]
    xs = x.reshape((T, TB // T) + x.shape[1:]).astype(jnp.float32)
    th = jnp.float32(thresh)
    mem = 0.5 * th
    spikes, spike_count = [], 0.0
    for t in range(T):
        mem = mem + xs[t]
        s = (mem - th >= 0).astype(jnp.float32)
        mem = mem - s * th
        spikes.append(s)
        spike_count = spike_count + s
    compen_mem = mem - th / 2
    compen_value = jnp.minimum(compen_mem + spike_count * th, T * th)
    safe_count = jnp.where(spike_count > 0, spike_count, 1.0)
    new_thre = jnp.where((compen_value > 0) & (spike_count > 0),
                         compen_value / safe_count, 0.0)
    out = jnp.stack([s * new_thre for s in spikes], axis=0)
    return out.reshape(x.shape).astype(x.dtype)


def if_ref_qcfs(x, thresh, L):
    th = jnp.float32(thresh)
    y = jnp.clip(x.astype(jnp.float32) / th, 0.0, 1.0)
    return (jnp.floor(y * L + 0.5) / L * th).astype(x.dtype)


# ---------------------------------------------------------------------------
if __name__ == "__main__":
    key = jax.random.PRNGKey(0)
    k1, k2, k3, k4 = jax.random.split(key, 4)

    thresh = 8.0
    L = 8

    # ---- temporal (SNN) mode: T=4, B=2, C=4, H=W=16 -> x is (T*B, C, H, W)
    T = 4
    B, C, H, W = 2, 4, 16, 16
    x_snn = jax.random.uniform(k1, (T * B, C, H, W), jnp.float32,
                               minval=0.0, maxval=16.0)
    y_snn = jax.block_until_ready(if_forward(x_snn, thresh, T=T, L=L))
    y_snn_ref = if_ref_temporal(x_snn, thresh, T)
    assert y_snn.shape == x_snn.shape
    assert y_snn.dtype == x_snn.dtype
    assert jnp.allclose(y_snn, y_snn_ref, atol=1e-5, rtol=1e-5)

    # ---- bf16 temporal path (I/O in bf16, math in f32)
    x_bf = x_snn.astype(jnp.bfloat16)
    y_bf = jax.block_until_ready(if_forward(x_bf, thresh, T=T, L=L))
    y_bf_ref = if_ref_temporal(x_bf, thresh, T)
    assert y_bf.dtype == jnp.bfloat16
    assert jnp.allclose(y_bf.astype(jnp.float32), y_bf_ref.astype(jnp.float32),
                        atol=5e-2, rtol=5e-2)

    # ---- long temporal window (fori_loop path) + non-1024-aligned padding
    T2 = 12
    x_long = jax.random.uniform(k3, (T2 * 2, 4, 8, 8), jnp.float32,
                                minval=0.0, maxval=16.0)
    y_long = jax.block_until_ready(if_forward(x_long, thresh, T=T2, L=L))
    assert jnp.allclose(y_long, if_ref_temporal(x_long, thresh, T2),
                        atol=1e-5, rtol=1e-5)

    # ---- ANN (T == 0) QCFS mode
    x_ann = jax.random.normal(k2, (B, C, 16, 16), jnp.float32) * 6.0
    y_ann = jax.block_until_ready(if_forward(x_ann, thresh, T=0, L=L))
    y_ann_ref = if_ref_qcfs(x_ann, thresh, L)
    assert y_ann.shape == x_ann.shape
    assert jnp.allclose(y_ann, y_ann_ref, atol=1e-5, rtol=1e-5)

    # padding / non-128-aligned lane check (3*5*7*7 = 735 elements)
    x_odd = jax.random.normal(k4, (3, 5, 7, 7), jnp.float32) * 4.0
    y_odd = jax.block_until_ready(if_forward(x_odd, thresh, T=0, L=L))
    assert jnp.allclose(y_odd, if_ref_qcfs(x_odd, thresh, L), atol=1e-5, rtol=1e-5)

    # TODO(synk): host-side bookkeeping (thre_history list, adaptive-thresh
    # buffer updates, CSV export) is stateful Python/IO and is not part of the
    # device kernel; it does not affect the returned tensor because the module
    # overrides `current_thre = thre`.
    print("KERNEL_OK")
</pallas_src>

<mosaic_0001>
module attributes {stable_mosaic.version = 11 : i64} {
  func.func @_if_temporal_kernel(%arg0: i32, %arg1: memref<1xf32, #tpu.memory_space<smem>>, %arg2: memref<4x8x128xf32, #tpu.memory_space<vmem>>, %arg3: memref<4x8x128xf32, #tpu.memory_space<vmem>>, %arg4: memref<8x128xf32, #tpu.memory_space<vmem>>, %arg5: memref<8x128xf32, #tpu.memory_space<vmem>>, %arg6: memref<4x8x128xf32, #tpu.memory_space<vmem>>) attributes {dimension_semantics = [#tpu.dimension_semantics<parallel>], iteration_bounds = array<i64: 2>, scalar_prefetch = 0 : i64, scratch_operands = 3 : i64, tpu.core_type = #tpu.core_type<tc>, window_params = [{transform_indices = @transform_0, window_bounds = array<i64: 1>}, {transform_indices = @transform_1, window_bounds = array<i64: 4, 8, 128>}, {transform_indices = @transform_2, window_bounds = array<i64: 4, 8, 128>}]} {
    %c0 = arith.constant 0 : index
    %0 = memref.load %arg1[%c0] : memref<1xf32, #tpu.memory_space<smem>>
    %cst = arith.constant 5.000000e-01 : f32
    %1 = arith.mulf %cst, %0 : f32
    %2 = vector.broadcast %1 : f32 to vector<8x128xf32>
    %c0_0 = arith.constant 0 : index
    %c0_1 = arith.constant 0 : index
    %3 = vector.load %arg4[%c0_0, %c0_1] : memref<8x128xf32, #tpu.memory_space<vmem>>, vector<8x128xf32>
    tpu.vector_store %arg4[%c0_0, %c0_1], %2 {strides = array<i32>} : memref<8x128xf32, #tpu.memory_space<vmem>>, vector<8x128xf32>,
    %cst_2 = arith.constant 0.000000e+00 : f32
    %4 = vector.broadcast %cst_2 : f32 to vector<8x128xf32>
    %c0_3 = arith.constant 0 : index
    %c0_4 = arith.constant 0 : index
    %5 = vector.load %arg5[%c0_3, %c0_4] : memref<8x128xf32, #tpu.memory_space<vmem>>, vector<8x128xf32>
    tpu.vector_store %arg5[%c0_3, %c0_4], %4 {strides = array<i32>} : memref<8x128xf32, #tpu.memory_space<vmem>>, vector<8x128xf32>,
    %c0_5 = arith.constant 0 : index
    %c0_6 = arith.constant 0 : index
    %6 = vector.load %arg4[%c0_5, %c0_6] : memref<8x128xf32, #tpu.memory_space<vmem>>, vector<8x128xf32>
    %c0_7 = arith.constant 0 : index
    %c0_8 = arith.constant 0 : index
    %c0_9 = arith.constant 0 : index
    %7 = vector.load %arg2[%c0_7, %c0_8, %c0_9] : memref<4x8x128xf32, #tpu.memory_space<vmem>>, vector<1x8x128xf32>
    %8 = vector.shape_cast %7 : vector<1x8x128xf32> to vector<8x128xf32>
    %9 = arith.addf %6, %8 : vector<8x128xf32>
    %10 = vector.broadcast %0 : f32 to vector<8x128xf32>
    %11 = arith.cmpf oge, %9, %10 : vector<8x128xf32>
    %12 = arith.extui %11 : vector<8x128xi1> to vector<8x128xi32>
    %13 = arith.sitofp %12 : vector<8x128xi32> to vector<8x128xf32>
    %14 = vector.broadcast %0 : f32 to vector<8x128xf32>
    %15 = arith.subf %9, %14 : vector<8x128xf32>
    %16 = arith.select %11, %15, %9 : vector<8x128xi1>, vector<8x128xf32>
    %c0_10 = arith.constant 0 : index
    %c0_11 = arith.constant 0 : index
    %17 = vector.load %arg4[%c0_10, %c0_11] : memref<8x128xf32, #tpu.memory_space<vmem>>, vector<8x128xf32>
    tpu.vector_store %arg4[%c0_10, %c0_11], %16 {strides = array<i32>} : memref<8x128xf32, #tpu.memory_space<vmem>>, vector<8x128xf32>,
    %c0_12 = arith.constant 0 : index
    %c0_13 = arith.constant 0 : index
    %18 = vector.load %arg5[%c0_12, %c0_13] : memref<8x128xf32, #tpu.memory_space<vmem>>, vector<8x128xf32>
    %19 = arith.addf %18, %13 : vector<8x128xf32>
    %c0_14 = arith.constant 0 : index
    %c0_15 = arith.constant 0 : index
    %20 = vector.load %arg5[%c0_14, %c0_15] : memref<8x128xf32, #tpu.memory_space<vmem>>, vector<8x128xf32>
    tpu.vector_store %arg5[%c0_14, %c0_15], %19 {strides = array<i32>} : memref<8x128xf32, #tpu.memory_space<vmem>>, vector<8x128xf32>,
    %c0_16 = arith.constant 0 : index
    %c0_17 = arith.constant 0 : index
    %c0_18 = arith.constant 0 : index
    %21 = vector.load %arg6[%c0_16, %c0_17, %c0_18] : memref<4x8x128xf32, #tpu.memory_space<vmem>>, vector<1x8x128xf32>
    %22 = vector.shape_cast %21 : vector<1x8x128xf32> to vector<8x128xf32>
    %23 = vector.shape_cast %13 : vector<8x128xf32> to vector<1x8x128xf32>
    tpu.vector_store %arg6[%c0_16, %c0_17, %c0_18], %23 {strides = array<i32>} : memref<4x8x128xf32, #tpu.memory_space<vmem>>, vector<1x8x128xf32>,
    %c0_19 = arith.constant 0 : index
    %c0_20 = arith.constant 0 : index
    %24 = vector.load %arg4[%c0_19, %c0_20] : memref<8x128xf32, #tpu.memory_space<vmem>>, vector<8x128xf32>
    %c1 = arith.constant 1 : index
    %c0_21 = arith.constant 0 : index
    %c0_22 = arith.constant 0 : index
    %25 = vector.load %arg2[%c1, %c0_21, %c0_22] : memref<4x8x128xf32, #tpu.memory_space<vmem>>, vector<1x8x128xf32>
    %26 = vector.shape_cast %25 : vector<1x8x128xf32> to vector<8x128xf32>
    %27 = arith.addf %24, %26 : vector<8x128xf32>
    %28 = vector.broadcast %0 : f32 to vector<8x128xf32>
    %29 = arith.cmpf oge, %27, %28 : vector<8x128xf32>
    %30 = arith.extui %29 : vector<8x128xi1> to vector<8x128xi32>
    %31 = arith.sitofp %30 : vector<8x128xi32> to vector<8x128xf32>
    %32 = vector.broadcast %0 : f32 to vector<8x128xf32>
    %33 = arith.subf %27, %32 : vector<8x128xf32>
    %34 = arith.select %29, %33, %27 : vector<8x128xi1>, vector<8x128xf32>
    %c0_23 = arith.constant 0 : index
    %c0_24 = arith.constant 0 : index
    %35 = vector.load %arg4[%c0_23, %c0_24] : memref<8x128xf32, #tpu.memory_space<vmem>>, vector<8x128xf32>
    tpu.vector_store %arg4[%c0_23, %c0_24], %34 {strides = array<i32>} : memref<8x128xf32, #tpu.memory_space<vmem>>, vector<8x128xf32>,
    %c0_25 = arith.constant 0 : index
    %c0_26 = arith.constant 0 : index
    %36 = vector.load %arg5[%c0_25, %c0_26] : memref<8x128xf32, #tpu.memory_space<vmem>>, vector<8x128xf32>
    %37 = arith.addf %36, %31 : vector<8x128xf32>
    %c0_27 = arith.constant 0 : index
    %c0_28 = arith.constant 0 : index
    %38 = vector.load %arg5[%c0_27, %c0_28] : memref<8x128xf32, #tpu.memory_space<vmem>>, vector<8x128xf32>
    tpu.vector_store %arg5[%c0_27, %c0_28], %37 {strides = array<i32>} : memref<8x128xf32, #tpu.memory_space<vmem>>, vector<8x128xf32>,
    %c1_29 = arith.constant 1 : index
    %c0_30 = arith.constant 0 : index
    %c0_31 = arith.constant 0 : index
    %39 = vector.load %arg6[%c1_29, %c0_30, %c0_31] : memref<4x8x128xf32, #tpu.memory_space<vmem>>, vector<1x8x128xf32>
    %40 = vector.shape_cast %39 : vector<1x8x128xf32> to vector<8x128xf32>
    %41 = vector.shape_cast %31 : vector<8x128xf32> to vector<1x8x128xf32>
    tpu.vector_store %arg6[%c1_29, %c0_30, %c0_31], %41 {strides = array<i32>} : memref<4x8x128xf32, #tpu.memory_space<vmem>>, vector<1x8x128xf32>,
    %c0_32 = arith.constant 0 : index
    %c0_33 = arith.constant 0 : index
    %42 = vector.load %arg4[%c0_32, %c0_33] : memref<8x128xf32, #tpu.memory_space<vmem>>, vector<8x128xf32>
    %c2 = arith.constant 2 : index
    %c0_34 = arith.constant 0 : index
    %c0_35 = arith.constant 0 : index
    %43 = vector.load %arg2[%c2, %c0_34, %c0_35] : memref<4x8x128xf32, #tpu.memory_space<vmem>>, vector<1x8x128xf32>
    %44 = vector.shape_cast %43 : vector<1x8x128xf32> to vector<8x128xf32>
    %45 = arith.addf %42, %44 : vector<8x128xf32>
    %46 = vector.broadcast %0 : f32 to vector<8x128xf32>
    %47 = arith.cmpf oge, %45, %46 : vector<8x128xf32>
    %48 = arith.extui %47 : vector<8x128xi1> to vector<8x128xi32>
    %49 = arith.sitofp %48 : vector<8x128xi32> to vector<8x128xf32>
    %50 = vector.broadcast %0 : f32 to vector<8x128xf32>
    %51 = arith.subf %45, %50 : vector<8x128xf32>
    %52 = arith.select %47, %51, %45 : vector<8x128xi1>, vector<8x128xf32>
    %c0_36 = arith.constant 0 : index
    %c0_37 = arith.constant 0 : index
    %53 = vector.load %arg4[%c0_36, %c0_37] : memref<8x128xf32, #tpu.memory_space<vmem>>, vector<8x128xf32>
    tpu.vector_store %arg4[%c0_36, %c0_37], %52 {strides = array<i32>} : memref<8x128xf32, #tpu.memory_space<vmem>>, vector<8x128xf32>,
    %c0_38 = arith.constant 0 : index
    %c0_39 = arith.constant 0 : index
    %54 = vector.load %arg5[%c0_38, %c0_39] : memref<8x128xf32, #tpu.memory_space<vmem>>, vector<8x128xf32>
    %55 = arith.addf %54, %49 : vector<8x128xf32>
    %c0_40 = arith.constant 0 : index
    %c0_41 = arith.constant 0 : index
    %56 = vector.load %arg5[%c0_40, %c0_41] : memref<8x128xf32, #tpu.memory_space<vmem>>, vector<8x128xf32>
    tpu.vector_store %arg5[%c0_40, %c0_41], %55 {strides = array<i32>} : memref<8x128xf32, #tpu.memory_space<vmem>>, vector<8x128xf32>,
    %c2_42 = arith.constant 2 : index
    %c0_43 = arith.constant 0 : index
    %c0_44 = arith.constant 0 : index
    %57 = vector.load %arg6[%c2_42, %c0_43, %c0_44] : memref<4x8x128xf32, #tpu.memory_space<vmem>>, vector<1x8x128xf32>
    %58 = vector.shape_cast %57 : vector<1x8x128xf32> to vector<8x128xf32>
    %59 = vector.shape_cast %49 : vector<8x128xf32> to vector<1x8x128xf32>
    tpu.vector_store %arg6[%c2_42, %c0_43, %c0_44], %59 {strides = array<i32>} : memref<4x8x128xf32, #tpu.memory_space<vmem>>, vector<1x8x128xf32>,
    %c0_45 = arith.constant 0 : index
    %c0_46 = arith.constant 0 : index
    %60 = vector.load %arg4[%c0_45, %c0_46] : memref<8x128xf32, #tpu.memory_space<vmem>>, vector<8x128xf32>
    %c3 = arith.constant 3 : index
    %c0_47 = arith.constant 0 : index
    %c0_48 = arith.constant 0 : index
    %61 = vector.load %arg2[%c3, %c0_47, %c0_48] : memref<4x8x128xf32, #tpu.memory_space<vmem>>, vector<1x8x128xf32>
    %62 = vector.shape_cast %61 : vector<1x8x128xf32> to vector<8x128xf32>
    %63 = arith.addf %60, %62 : vector<8x128xf32>
    %64 = vector.broadcast %0 : f32 to vector<8x128xf32>
    %65 = arith.cmpf oge, %63, %64 : vector<8x128xf32>
    %66 = arith.extui %65 : vector<8x128xi1> to vector<8x128xi32>
    %67 = arith.sitofp %66 : vector<8x128xi32> to vector<8x128xf32>
    %68 = vector.broadcast %0 : f32 to vector<8x128xf32>
    %69 = arith.subf %63, %68 : vector<8x128xf32>
    %70 = arith.select %65, %69, %63 : vector<8x128xi1>, vector<8x128xf32>
    %c0_49 = arith.constant 0 : index
    %c0_50 = arith.constant 0 : index
    %71 = vector.load %arg4[%c0_49, %c0_50] : memref<8x128xf32, #tpu.memory_space<vmem>>, vector<8x128xf32>
    tpu.vector_store %arg4[%c0_49, %c0_50], %70 {strides = array<i32>} : memref<8x128xf32, #tpu.memory_space<vmem>>, vector<8x128xf32>,
    %c0_51 = arith.constant 0 : index
    %c0_52 = arith.constant 0 : index
    %72 = vector.load %arg5[%c0_51, %c0_52] : memref<8x128xf32, #tpu.memory_space<vmem>>, vector<8x128xf32>
    %73 = arith.addf %72, %67 : vector<8x128xf32>
    %c0_53 = arith.constant 0 : index
    %c0_54 = arith.constant 0 : index
    %74 = vector.load %arg5[%c0_53, %c0_54] : memref<8x128xf32, #tpu.memory_space<vmem>>, vector<8x128xf32>
    tpu.vector_store %arg5[%c0_53, %c0_54], %73 {strides = array<i32>} : memref<8x128xf32, #tpu.memory_space<vmem>>, vector<8x128xf32>,
    %c3_55 = arith.constant 3 : index
    %c0_56 = arith.constant 0 : index
    %c0_57 = arith.constant 0 : index
    %75 = vector.load %arg6[%c3_55, %c0_56, %c0_57] : memref<4x8x128xf32, #tpu.memory_space<vmem>>, vector<1x8x128xf32>
    %76 = vector.shape_cast %75 : vector<1x8x128xf32> to vector<8x128xf32>
    %77 = vector.shape_cast %67 : vector<8x128xf32> to vector<1x8x128xf32>
    tpu.vector_store %arg6[%c3_55, %c0_56, %c0_57], %77 {strides = array<i32>} : memref<4x8x128xf32, #tpu.memory_space<vmem>>, vector<1x8x128xf32>,
    %c0_58 = arith.constant 0 : index
    %c0_59 = arith.constant 0 : index
    %78 = vector.load %arg4[%c0_58, %c0_59] : memref<8x128xf32, #tpu.memory_space<vmem>>, vector<8x128xf32>
    %c0_60 = arith.constant 0 : index
    %c0_61 = arith.constant 0 : index
    %79 = vector.load %arg5[%c0_60, %c0_61] : memref<8x128xf32, #tpu.memory_space<vmem>>, vector<8x128xf32>
    %80 = vector.broadcast %1 : f32 to vector<8x128xf32>
    %81 = arith.subf %78, %80 : vector<8x128xf32>
    %82 = vector.broadcast %0 : f32 to vector<8x128xf32>
    %83 = arith.mulf %79, %82 : vector<8x128xf32>
    %84 = arith.addf %81, %83 : vector<8x128xf32>
    %cst_62 = arith.constant 4.000000e+00 : f32
    %85 = arith.mulf %cst_62, %0 : f32
    %86 = vector.broadcast %85 : f32 to vector<8x128xf32>
    %87 = arith.minimumf %84, %86 : vector<8x128xf32>
    %cst_63 = arith.constant 0.000000e+00 : f32
    %88 = vector.broadcast %cst_63 : f32 to vector<8x128xf32>
    %89 = arith.cmpf ogt, %79, %88 : vector<8x128xf32>
    %cst_64 = arith.constant 1.000000e+00 : f32
    %90 = vector.broadcast %cst_64 : f32 to vector<8x128xf32>
    %91 = arith.select %89, %79, %90 : vector<8x128xi1>, vector<8x128xf32>
    %cst_65 = arith.constant 0.000000e+00 : f32
    %92 = vector.broadcast %cst_65 : f32 to vector<8x128xf32>
    %93 = arith.cmpf ogt, %87, %92 : vector<8x128xf32>
    %cst_66 = arith.constant 0.000000e+00 : f32
    %94 = vector.broadcast %cst_66 : f32 to vector<8x128xf32>
    %95 = arith.cmpf ogt, %79, %94 : vector<8x128xf32>
    %96 = arith.andi %93, %95 : vector<8x128xi1>
    %97 = arith.divf %87, %91 : vector<8x128xf32>
    %cst_67 = arith.constant 0.000000e+00 : f32
    %98 = vector.broadcast %cst_67 : f32 to vector<8x128xf32>
    %99 = arith.select %96, %97, %98 : vector<8x128xi1>, vector<8x128xf32>
    %c0_68 = arith.constant 0 : index
    %c0_69 = arith.constant 0 : index
    %c0_70 = arith.constant 0 : index
    %100 = vector.load %arg6[%c0_68, %c0_69, %c0_70] : memref<4x8x128xf32, #tpu.memory_space<vmem>>, vector<1x8x128xf32>
    %101 = vector.shape_cast %100 : vector<1x8x128xf32> to vector<8x128xf32>
    %102 = arith.mulf %101, %99 : vector<8x128xf32>
    %c0_71 = arith.constant 0 : index
    %c0_72 = arith.constant 0 : index
    %c0_73 = arith.constant 0 : index
    %103 = vector.load %arg3[%c0_71, %c0_72, %c0_73] : memref<4x8x128xf32, #tpu.memory_space<vmem>>, vector<1x8x128xf32>
    %104 = vector.shape_cast %103 : vector<1x8x128xf32> to vector<8x128xf32>
    %105 = vector.shape_cast %102 : vector<8x128xf32> to vector<1x8x128xf32>
    tpu.vector_store %arg3[%c0_71, %c0_72, %c0_73], %105 {strides = array<i32>} : memref<4x8x128xf32, #tpu.memory_space<vmem>>, vector<1x8x128xf32>,
    %c1_74 = arith.constant 1 : index
    %c0_75 = arith.constant 0 : index
    %c0_76 = arith.constant 0 : index
    %106 = vector.load %arg6[%c1_74, %c0_75, %c0_76] : memref<4x8x128xf32, #tpu.memory_space<vmem>>, vector<1x8x128xf32>
    %107 = vector.shape_cast %106 : vector<1x8x128xf32> to vector<8x128xf32>
    %108 = arith.mulf %107, %99 : vector<8x128xf32>
    %c1_77 = arith.constant 1 : index
    %c0_78 = arith.constant 0 : index
    %c0_79 = arith.constant 0 : index
    %109 = vector.load %arg3[%c1_77, %c0_78, %c0_79] : memref<4x8x128xf32, #tpu.memory_space<vmem>>, vector<1x8x128xf32>
    %110 = vector.shape_cast %109 : vector<1x8x128xf32> to vector<8x128xf32>
    %111 = vector.shape_cast %108 : vector<8x128xf32> to vector<1x8x128xf32>
    tpu.vector_store %arg3[%c1_77, %c0_78, %c0_79], %111 {strides = array<i32>} : memref<4x8x128xf32, #tpu.memory_space<vmem>>, vector<1x8x128xf32>,
    %c2_80 = arith.constant 2 : index
    %c0_81 = arith.constant 0 : index
    %c0_82 = arith.constant 0 : index
    %112 = vector.load %arg6[%c2_80, %c0_81, %c0_82] : memref<4x8x128xf32, #tpu.memory_space<vmem>>, vector<1x8x128xf32>
    %113 = vector.shape_cast %112 : vector<1x8x128xf32> to vector<8x128xf32>
    %114 = arith.mulf %113, %99 : vector<8x128xf32>
    %c2_83 = arith.constant 2 : index
    %c0_84 = arith.constant 0 : index
    %c0_85 = arith.constant 0 : index
    %115 = vector.load %arg3[%c2_83, %c0_84, %c0_85] : memref<4x8x128xf32, #tpu.memory_space<vmem>>, vector<1x8x128xf32>
    %116 = vector.shape_cast %115 : vector<1x8x128xf32> to vector<8x128xf32>
    %117 = vector.shape_cast %114 : vector<8x128xf32> to vector<1x8x128xf32>
    tpu.vector_store %arg3[%c2_83, %c0_84, %c0_85], %117 {strides = array<i32>} : memref<4x8x128xf32, #tpu.memory_space<vmem>>, vector<1x8x128xf32>,
    %c3_86 = arith.constant 3 : index
    %c0_87 = arith.constant 0 : index
    %c0_88 = arith.constant 0 : index
    %118 = vector.load %arg6[%c3_86, %c0_87, %c0_88] : memref<4x8x128xf32, #tpu.memory_space<vmem>>, vector<1x8x128xf32>
    %119 = vector.shape_cast %118 : vector<1x8x128xf32> to vector<8x128xf32>
    %120 = arith.mulf %119, %99 : vector<8x128xf32>
    %c3_89 = arith.constant 3 : index
    %c0_90 = arith.constant 0 : index
    %c0_91 = arith.constant 0 : index
    %121 = vector.load %arg3[%c3_89, %c0_90, %c0_91] : memref<4x8x128xf32, #tpu.memory_space<vmem>>, vector<1x8x128xf32>
    %122 = vector.shape_cast %121 : vector<1x8x128xf32> to vector<8x128xf32>
    %123 = vector.shape_cast %120 : vector<8x128xf32> to vector<1x8x128xf32>
    tpu.vector_store %arg3[%c3_89, %c0_90, %c0_91], %123 {strides = array<i32>} : memref<4x8x128xf32, #tpu.memory_space<vmem>>, vector<1x8x128xf32>,
    return
  }
  func.func @transform_0(%arg0: i32) -> i32 {
    %c0_i32 = arith.constant 0 : i32
    %c0_i32_0 = arith.constant 0 : i32
    return %c0_i32 : i32
  }
  func.func @transform_1(%arg0: i32) -> (i32, i32, i32) {
    %c0_i32 = arith.constant 0 : i32
    %c0_i32_0 = arith.constant 0 : i32
    %c0_i32_1 = arith.constant 0 : i32
    return %c0_i32, %arg0, %c0_i32_0 : i32, i32, i32
  }
  func.func @transform_2(%arg0: i32) -> (i32, i32, i32) {
    %c0_i32 = arith.constant 0 : i32
    %c0_i32_0 = arith.constant 0 : i32
    %c0_i32_1 = arith.constant 0 : i32
    return %c0_i32, %arg0, %c0_i32_0 : i32, i32, i32
  }
}

</mosaic_0001>

<llo_original>
// kernel: tpu_custom_call.1
$region0: #{tpu_custom_call.1}
  #allocation0 [shape = 'u32[]', space=smem, size = 0x4, offset = 0x4, fixed_abs, tag = 'smem constant byte address 0x4 - core index']
  #allocation1 [shape = 'u32[144,128]{1,0:T(1,128)}', space=vmem, size = 0x12000, scoped, tag = 'internal scratch']
  #allocation2 [shape = 'f32[8,128]{1,0:T(8,128)}', space=vmem, size = 0x1000, scoped, tag = 'scratch operand']
  #allocation3 [shape = 'f32[8,128]{1,0:T(8,128)}', space=vmem, size = 0x1000, scoped, tag = 'scratch operand']
  #allocation4 [shape = 'f32[4,8,128]{2,1,0:T(8,128)}', space=vmem, size = 0x4000, scoped, tag = 'scratch operand']
  #allocation5 [shape = 'f32[1]{0:T(128)S(6)}', space=smem, size = 0x200, scoped, tag = 'scoped memory for tpu_custom_call.1']
  %s0 = inlined_call_operand.<no memory space> [shape: f32[1], index: 0, kind: input, shape index: {}]
  %s1 = inlined_call_operand.hbm [shape: f32[4,16,128], index: 1, kind: input, shape index: {}]
  %s2 = inlined_call_operand.hbm [shape: f32[4,16,128], index: 2, kind: output, shape index: {}]
  %s3 = sld [smem:[#allocation0]]
  $region45: #{tpu_custom_call.1} parent=0
    _
  %s5 = ssub.s32 1, %s3
  %s6 = scalar_select 0, %s5, %s3
  %7 = sst [smem:[#allocation5]] %s0
  $region1: #{tpu_custom_call.1} parent=0
    #allocation6 [shape = 'u8[32768]{0}', space=vmem, size = 0x8000, scoped, tag = 'input window, operand 1']
    #allocation7 [shape = 's32[2]{0}', space=sflag, size = 0x8, scoped, tag = 'scoped memory for tpu_custom_call.1']
    #allocation8 [shape = 's32[2]{0}', space=sflag, size = 0x8, scoped, tag = 'scoped memory for tpu_custom_call.1']
    #allocation9 [shape = 'u8[32768]{0}', space=vmem, size = 0x8000, scoped, tag = 'output window, operand 0']
    %8 = vsyncpa [#allocation7], 0
    %s9 = scalar_lea.sflag [#allocation7], 1
    %10 = vsyncpa %s9, 0
    %11 = vsyncpa [#allocation8], 0
    %s12 = scalar_lea.sflag [#allocation8], 1
    %13 = vsyncpa %s12, 0
    loop: start=0, step=1, limit=4
    $region2: #{tpu_custom_call.1} parent=1 // loop_pre_header
      _
    $region3: #{tpu_custom_call.1} parent=1 // loop_header
      %s15 = sphi 0, %s19
      %p16 = scmp.ge.s32.totalorder %s15, 4
      %s23 = sphi 0, %s23
      %s25 = sphi 0, %s23
      %s26 = sphi 0, %s25
      %s40 = sphi 0, %s26
      %s46 = sphi 0, %s48
      %s49 = sphi 0, %s46
      %s50 = sphi 0, %s49
      %s66 = sphi 0, %s50
      %s72 = sphi 0, %s74
      %s75 = sphi 0, %s72
      %s76 = sphi 0, %s75
      %s92 = sphi 0, %s76
    $region4: #{tpu_custom_call.1} parent=1 // loop_header_branch
      %18 = sbr.rel (%p16) target = $region8
    $region5: #{tpu_custom_call.1} parent=1 // loop_body
      %s20 = ssub.s32 %s15, 1
      %s21 = ssub.s32 %s15, 2
      %s22 = sadd.s32 %s15, 1
      %s24 = sadd.s32 %s23, 1
      %p27 = scmp.eq.s32.totalorder %s15, 1
      %p28 = scmp.ne.s32.totalorder %s23, %s25
      %p29 = scmp.eq.s32.totalorder %s15, 0
      %p30 = por %p28, %p29
      %p31 = scmp.ne.s32.totalorder %s23, %s25
      %p32 = scmp.eq.s32.totalorder %s20, 1
      %p33 = por %p31, %p32
      %p34 = scmp.ne.s32.totalorder %s25, %s26
      %p35 = scmp.eq.s32.totalorder %s20, 0
      %p36 = por %p34, %p35
      %p37 = scmp.ne.s32.totalorder %s25, %s26
      %p38 = scmp.eq.s32.totalorder %s21, 1
      %p39 = por %p37, %p38
      %p41 = scmp.ne.s32.totalorder %s26, %s40
      %p42 = scmp.eq.s32.totalorder %s21, 0
      %p43 = por %p41, %p42
      %s44 = ssub.s32 %s15, %s22
      %p45 = scmp.eq.s32.totalorder %s44, 0
      %s47 = sadd.s32 %s46, 1
      %s48 = scalar_select %p45, %s46, %s47
      %p51 = pneg %p45
      %p52 = scmp.eq.s32.totalorder %s15, 1
      %p53 = por %p51, %p52
      %p54 = scmp.ne.s32.totalorder %s46, %s49
      %p55 = scmp.eq.s32.totalorder %s15, 0
      %p56 = por %p54, %p55
      %p57 = scmp.ne.s32.totalorder %s46, %s49
      %p58 = scmp.eq.s32.totalorder %s20, 1
      %p59 = por %p57, %p58
      %p60 = scmp.ne.s32.totalorder %s49, %s50
      %p61 = scmp.eq.s32.totalorder %s20, 0
      %p62 = por %p60, %p61
      %p63 = scmp.ne.s32.totalorder %s49, %s50
      %p64 = scmp.eq.s32.totalorder %s21, 1
      %p65 = por %p63, %p64
      %p67 = scmp.ne.s32.totalorder %s50, %s66
      %p68 = scmp.eq.s32.totalorder %s21, 0
      %p69 = por %p67, %p68
      %s70 = ssub.s32 %s15, %s22
      %p71 = scmp.eq.s32.totalorder %s70, 0
      %s73 = sadd.s32 %s72, 1
      %s74 = scalar_select %p71, %s72, %s73
      %p77 = pneg %p71
      %p78 = scmp.eq.s32.totalorder %s15, 1
      %p79 = por %p77, %p78
      %p80 = scmp.ne.s32.totalorder %s72, %s75
      %p81 = scmp.eq.s32.totalorder %s15, 0
      %p82 = por %p80, %p81
      %p83 = scmp.ne.s32.totalorder %s72, %s75
      %p84 = scmp.eq.s32.totalorder %s20, 1
      %p85 = por %p83, %p84
      %p86 = scmp.ne.s32.totalorder %s75, %s76
      %p87 = scmp.eq.s32.totalorder %s20, 0
      %p88 = por %p86, %p87
      %p89 = scmp.ne.s32.totalorder %s75, %s76
      %p90 = scmp.eq.s32.totalorder %s21, 1
      %p91 = por %p89, %p90
      %p93 = scmp.ne.s32.totalorder %s76, %s92
      %p94 = scmp.eq.s32.totalorder %s21, 0
      %p95 = por %p93, %p94
      %p96 = scmp.le.s32.totalorder 1, %s15
      %p97 = scmp.lt.s32.totalorder %s15, 3
      %p98 = pnand %p96, %p97
      %p99 = pneg %p98
      // Predicated region
      $region9: #{tpu_custom_call.1} parent=5 // pred_check
        _
      $region10: #{tpu_custom_call.1} parent=5 // pred_check_branch
        %101 = sbr.rel (%p98) target = $region12
      $region11: #{tpu_custom_call.1} parent=5 // pred_region
        %s102 = ssub.s32 %s15, 1
        // Predicated region
        $region13: #{tpu_custom_call.1} parent=11 // pred_check
          %p103 = pneg %p36
        $region14: #{tpu_custom_call.1} parent=11 // pred_check_branch
          %105 = sbr.rel (%p103) target = $region16
        $region15: #{tpu_custom_call.1} parent=11 // pred_region
          _
        $region16: #{tpu_custom_call.1} parent=11 // pred_fallthru
          _
      $region12: #{tpu_custom_call.1} parent=5 // pred_fallthru
        _
      %p106 = scmp.lt.s32.totalorder %s15, 2
      // Predicated region
      $region17: #{tpu_custom_call.1} parent=5 // pred_check
        %p107 = pneg %p106
      $region18: #{tpu_custom_call.1} parent=5 // pred_check_branch
        %109 = sbr.rel (%p107) target = $region20
      $region19: #{tpu_custom_call.1} parent=5 // pred_region
        // Predicated region
        $region21: #{tpu_custom_call.1} parent=19 // pred_check
          %p110 = pneg %p56
        $region22: #{tpu_custom_call.1} parent=19 // pred_check_branch
          %112 = sbr.rel (%p110) target = $region24
        $region23: #{tpu_custom_call.1} parent=19 // pred_region
          %s113 = sand.u32 %s46, 1
          %s114 = scalar_lea.sflag [#allocation7], %s113
          %s115 = sand.u32 %s46, 1
          %s116 = smul.addr %s115, 32
          %s117 = scalar_lea.vmem [#allocation6], %s116
          %s119 = ssub.s32 512, 512
          %120 = vsyncadd %s114, %s119
          %s121 = smul.addr %s15, 128
          %s122 = scalar_lea.hbm %s1, %s121
          %s123 = sshll.u32 %s117, 4
          %s124 = int_to_ptr.vmem [resolvable:$true] %s123
          %129 = dma.hbm_to_vmem [thread:$0]  %s122, 512, %s124, %s114, 256, 128, 8
        $region24: #{tpu_custom_call.1} parent=19 // pred_fallthru
          _
      $region20: #{tpu_custom_call.1} parent=5 // pred_fallthru
        _
      %p130 = scmp.le.s32.totalorder 1, %s15
      %p131 = scmp.lt.s32.totalorder %s15, 3
      %p132 = pnand %p130, %p131
      %p133 = pneg %p132
      // Predicated region
      $region25: #{tpu_custom_call.1} parent=5 // pred_check
        _
      $region26: #{tpu_custom_call.1} parent=5 // pred_check_branch
        %135 = sbr.rel (%p132) target = $region28
      $region27: #{tpu_custom_call.1} parent=5 // pred_region
        %s136 = ssub.s32 %s15, 1
        %s137 = sand.u32 %s49, 1
        %s138 = scalar_lea.sflag [#allocation7], %s137
        %s139 = sand.u32 %s49, 1
        %s140 = smul.addr %s139, 32
        %s141 = scalar_lea.vmem [#allocation6], %s140
        // Predicated region
        $region29: #{tpu_custom_call.1} parent=27 // pred_check
          %p142 = pneg %p62
        $region30: #{tpu_custom_call.1} parent=27 // pred_check_branch
          %144 = sbr.rel (%p142) target = $region32
        $region31: #{tpu_custom_call.1} parent=27 // pred_region
          %145 = dma.done %s138, 512
        $region32: #{tpu_custom_call.1} parent=27 // pred_fallthru
          _
        %p146 = pneg %p36
        %p147 = pneg %p33
        %s148 = sand.u32 %s49, 1
        %s149 = scalar_lea.sflag [#allocation7], %s148
        %s150 = sand.u32 %s49, 1
        %s151 = smul.addr %s150, 32
        %s152 = scalar_lea.vmem [#allocation6], %s151
        %p153 = pneg %p62
        %p154 = pneg %p59
        %p155 = pneg %p88
        %p156 = pneg %p85
        %s157 = sand.u32 %s75, 1
        %s158 = scalar_lea.sflag [#allocation8], %s157
        %s159 = sand.u32 %s75, 1
        %s160 = smul.addr %s159, 32
        %s161 = scalar_lea.vmem [#allocation9], %s160
        %s162 = sld [smem:[#allocation5]]
        %s163 = smul.f32 %s162, 0.5
        %v164 = vstv %s163
        %165 = vst [vmem:[#allocation2] sm:$0xff] %v164
        %166 = vst [vmem:[#allocation3] sm:$0xff] 0.0
        %v167 = vld [vmem:[#allocation2] sm:$0xff]
        %v168 = vld [vmem:[%s141] sm:$0xff]
        %v169 = vadd.f32 %v167, %v168
        %v170 = vstv %s162
        %vm171 = vcmp.ge.f32.partialorder %v169, %v170
        %v172 = vsel %vm171, 1, 0
        %v173 = vcvt.s32.f32 %v172
        %v174 = vsub.f32 %v169, %v170
        %v175 = vsel %vm171, %v174, %v169
        %176 = vst [vmem:[#allocation2] sm:$0xff] %v175
        %v177 = vld [vmem:[#allocation3] sm:$0xff]
        %v178 = vadd.f32 %v177, %v173
        %179 = vst [vmem:[#allocation3] sm:$0xff] %v178
        %180 = vst [vmem:[#allocation4] sm:$0xff] %v173
        %v181 = vld [vmem:[#allocation2] sm:$0xff]
        %s182 = scalar_lea.vmem %s141, 8 [#allocation6]
        %v183 = vld [vmem:[%s182] sm:$0xff]
        %v184 = vadd.f32 %v181, %v183
        %vm185 = vcmp.ge.f32.partialorder %v184, %v170
        %v186 = vsel %vm185, 1, 0
        %v187 = vcvt.s32.f32 %v186
        %v188 = vsub.f32 %v184, %v170
        %v189 = vsel %vm185, %v188, %v184
        %190 = vst [vmem:[#allocation2] sm:$0xff] %v189
        %v191 = vld [vmem:[#allocation3] sm:$0xff]
        %v192 = vadd.f32 %v191, %v187
        %193 = vst [vmem:[#allocation3] sm:$0xff] %v192
        %s194 = scalar_lea.vmem [#allocation4], 8
        %195 = vst [vmem:[%s194] sm:$0xff] %v187
        %v196 = vld [vmem:[#allocation2] sm:$0xff]
        %s197 = scalar_lea.vmem %s141, 16 [#allocation6]
        %v198 = vld [vmem:[%s197] sm:$0xff]
        %v199 = vadd.f32 %v196, %v198
        %vm200 = vcmp.ge.f32.partialorder %v199, %v170
        %v201 = vsel %vm200, 1, 0
        %v202 = vcvt.s32.f32 %v201
        %v203 = vsub.f32 %v199, %v170
        %v204 = vsel %vm200, %v203, %v199
        %205 = vst [vmem:[#allocation2] sm:$0xff] %v204
        %v206 = vld [vmem:[#allocation3] sm:$0xff]
        %v207 = vadd.f32 %v206, %v202
        %208 = vst [vmem:[#allocation3] sm:$0xff] %v207
        %s209 = scalar_lea.vmem [#allocation4], 16
        %210 = vst [vmem:[%s209] sm:$0xff] %v202
        %v211 = vld [vmem:[#allocation2] sm:$0xff]
        %s212 = scalar_lea.vmem %s141, 24 [#allocation6]
        %v213 = vld [vmem:[%s212] sm:$0xff]
        %v214 = vadd.f32 %v211, %v213
        %vm215 = vcmp.ge.f32.partialorder %v214, %v170
        %v216 = vsel %vm215, 1, 0
        %v217 = vcvt.s32.f32 %v216
        %v218 = vsub.f32 %v214, %v170
        %v219 = vsel %vm215, %v218, %v214
        %220 = vst [vmem:[#allocation2] sm:$0xff] %v219
        %v221 = vld [vmem:[#allocation3] sm:$0xff]
        %v222 = vadd.f32 %v221, %v217
        %223 = vst [vmem:[#allocation3] sm:$0xff] %v222
        %s224 = scalar_lea.vmem [#allocation4], 24
        %225 = vst [vmem:[%s224] sm:$0xff] %v217
        %v226 = vld [vmem:[#allocation2] sm:$0xff]
        %v227 = vld [vmem:[#allocation3] sm:$0xff]
        %v228 = vsub.f32 %v226, %v164
        %v229 = vmul.f32 %v227, %v170
        %v230 = vadd.f32 %v228, %v229
        %s231 = smul.f32 %s162, 4.0
        %v232 = vstv %s231
        %v233 = vmin.f32 %v230, %v232
        %vm234 = vcmp.gt.f32.partialorder %v227, 0.0
        %v235 = vsel %vm234, %v227, 1.0
        %vm236 = vcmp.gt.f32.partialorder %v233, 0.0
        %vm237 = vmand %vm236, %vm234
        %v238 = vrcp.pop %v235
        %v239 = vmul.f32 %v233, %v238
        %v240 = vsel %vm237, %v239, 0.0
        %v241 = vld [vmem:[#allocation4] sm:$0xff]
        %v242 = vmul.f32 %v241, %v240
        %243 = vst [vmem:[%s161] sm:$0xff] %v242
        %v244 = vld [vmem:[%s194] sm:$0xff]
        %v245 = vmul.f32 %v244, %v240
        %s246 = scalar_lea.vmem %s161, 8 [#allocation9]
        %247 = vst [vmem:[%s246] sm:$0xff] %v245
        %v248 = vld [vmem:[%s209] sm:$0xff]
        %v249 = vmul.f32 %v248, %v240
        %s250 = scalar_lea.vmem %s161, 16 [#allocation9]
        %251 = vst [vmem:[%s250] sm:$0xff] %v249
        %v252 = vld [vmem:[%s224] sm:$0xff]
        %v253 = vmul.f32 %v252, %v240
        %s254 = scalar_lea.vmem %s161, 24 [#allocation9]
        %255 = vst [vmem:[%s254] sm:$0xff] %v253
        %s256 = sand.u32 %s75, 1
        %s257 = scalar_lea.sflag [#allocation8], %s256
        %s258 = sand.u32 %s75, 1
        %s259 = smul.addr %s258, 32
        %s260 = scalar_lea.vmem [#allocation9], %s259
        // Predicated region
        $region33: #{tpu_custom_call.1} parent=27 // pred_check
          %p261 = pneg %p85
        $region34: #{tpu_custom_call.1} parent=27 // pred_check_branch
          %263 = sbr.rel (%p261) target = $region36
        $region35: #{tpu_custom_call.1} parent=27 // pred_region
          %s265 = ssub.s32 512, 512
          %266 = vsyncadd %s257, %s265
          %s267 = smul.addr %s20, 128
          %s268 = scalar_lea.hbm %s2, %s267
          %s269 = sshll.u32 %s260, 4
          %s270 = int_to_ptr.vmem [resolvable:$true] %s269
          %275 = dma.vmem_to_hbm [thread:$0]  %s270, 512, %s268, %s257, 128, 256, 8
        $region36: #{tpu_custom_call.1} parent=27 // pred_fallthru
          _
      $region28: #{tpu_custom_call.1} parent=5 // pred_fallthru
        _
      %p276 = scmp.le.s32.totalorder 2, %s15
      // Predicated region
      $region37: #{tpu_custom_call.1} parent=5 // pred_check
        %p277 = pneg %p276
      $region38: #{tpu_custom_call.1} parent=5 // pred_check_branch
        %279 = sbr.rel (%p277) target = $region40
      $region39: #{tpu_custom_call.1} parent=5 // pred_region
        %s280 = ssub.s32 %s15, 2
        // Predicated region
        $region41: #{tpu_custom_call.1} parent=39 // pred_check
          %p281 = pneg %p91
        $region42: #{tpu_custom_call.1} parent=39 // pred_check_branch
          %283 = sbr.rel (%p281) target = $region44
        $region43: #{tpu_custom_call.1} parent=39 // pred_region
          %s284 = sand.u32 %s76, 1
          %s285 = scalar_lea.sflag [#allocation8], %s284
          %s286 = sand.u32 %s76, 1
          %s287 = smul.addr %s286, 32
          %s288 = scalar_lea.vmem [#allocation9], %s287
          %289 = dma.done %s285, 512
        $region44: #{tpu_custom_call.1} parent=39 // pred_fallthru
          _
      $region40: #{tpu_custom_call.1} parent=5 // pred_fallthru
        _
    $region6: #{tpu_custom_call.1} parent=1 // loop_footer
      %s19 = sadd.s32 1, %s15
    $region7: #{tpu_custom_call.1} parent=1 // loop_footer_branch
      %14 = sbr.rel target = $region3
    $region8: #{tpu_custom_call.1} parent=1 // loop_exit
      _
    %290 = vsyncpa [#allocation7], 1
    %s291 = scalar_lea.sflag [#allocation7], 1
    %292 = vsyncpa %s291, 1
    %293 = vsyncpa [#allocation8], 1
    %s294 = scalar_lea.sflag [#allocation8], 1
    %295 = vsyncpa %s294, 1

</llo_original>
